<compile_context>
chip_gen: v7x
topology: tpu7x:2x2x1
jax: 0.10.0
libtpu: 0.0.40
codegen_flags: <defaults>
</compile_context>

<pallas_src>
import numpy as np
import jax
import jax.numpy as jnp
from jax.experimental import pallas as pl
from jax.experimental.pallas import tpu as pltpu


# ----------------------------------------------------------------------------
# Frequency-regularisation bookkeeping (ZMAT / IDROP / BMAT) and the inverse
# DCTs — small parameter prep, done in numpy / plain JAX (glue), faithful to
# the PyTorch module's first forward call.
# ----------------------------------------------------------------------------
def get_zidx_4d(shape):
    d0, d1, d2, d3 = shape
    m1, m2, m3, m4 = d0 + 1.0, d1 + 1.0, d2 + 1.0, d3 + 1.0
    a0 = np.arange(d0) + np.arange(d0) / m1
    a1 = np.arange(d1) + np.arange(d1) / (m1 * m2)
    a2 = np.arange(d2) + np.arange(d2) / (m1 * m2 * m3)
    a3 = np.arange(d3) + np.arange(d3) / (m1 * m2 * m3 * m4)
    return (a0[:, None, None, None] + a1[None, :, None, None]
            + a2[None, None, :, None] + a3[None, None, None, :])


def zidx_to_int(mat):
    flat = mat.reshape(-1)
    order = np.argsort(flat, kind="stable")
    rank = np.empty_like(order)
    rank[order] = np.arange(flat.size)
    return rank.reshape(mat.shape)


# Orthonormal inverse DCT-II (i.e. DCT-III, norm='ortho') expressed as a matmul.
# TODO(synk): reference calls an external `idct`/`idct_4d` (torch_dct); the
# orthonormal normalisation is assumed here.
def idct_matrix(n):
    kk = np.arange(n)[None, :]
    nn = np.arange(n)[:, None]
    m = np.sqrt(2.0 / n) * np.cos(np.pi * (2 * nn + 1) * kk / (2 * n))
    m[:, 0] = 1.0 / np.sqrt(n)
    return jnp.asarray(m, jnp.float32)


def idct_along(x, axis):
    m = idct_matrix(x.shape[axis])
    return jnp.moveaxis(jnp.tensordot(m, x, axes=([1], [axis])), 0, axis)


def idct_4d(x):
    for ax in range(4):
        x = idct_along(x, ax)
    return x


def idct_1d(x):
    return idct_matrix(x.shape[0]) @ x


def prepare_effective_params(weight, bias, zmat, idrop, bmat,
                             dropcnt, minnum):
    """Reproduces the drop-mask + iDCT part of ConvTranspose2d_FR4d.forward
    (first call: dropcnt == numel > minnum, so IDROP stays all-ones)."""
    if dropcnt > minnum:
        idrop = np.where(zmat >= dropcnt, 0.0, idrop)  # idx = ~(ZMAT < dropcnt)
    dropweight = weight * jnp.asarray(idrop, jnp.float32)
    weight_eff = idct_4d(dropweight)                    # (Cin, Cout, K, K)

    rate = float(idrop.sum() / idrop.size)
    pos = max(round(rate * bias.shape[0]), 15)
    bmat = bmat.copy()
    bmat[pos:] = 0.0
    dropbias = bias * jnp.asarray(bmat, jnp.float32)
    bias_eff = idct_1d(dropbias)                        # (Cout,)
    return weight_eff, bias_eff


# ----------------------------------------------------------------------------
# Pallas kernel: transposed conv (stride=1) as K banded MXU matmuls per batch
# element.  One grid step = one batch element.
# ----------------------------------------------------------------------------
def _convt_banded_kernel(x_ref, w_ref, b_ref, o_ref, xs_ref):
    # x_ref : (1, Cin, H, W)       bf16  NCHW input block
    # w_ref : (K, Cin*W, Cout*OW)  bf16  banded (kw-folded) flipped weights
    # b_ref : (1, Cout*OW)         f32   bias broadcast along OW (co-major)
    # o_ref : (1, Cout, OH, OW)    f32   NCHW output block
    # xs_ref: (PH, Cin*W)          f32   scratch: H-zero-padded rows with the
    #                                    channel planes flattened onto lanes.
    #   (f32 scratch keeps all in-VMEM stores word-aligned; values stay
    #    bf16-exact and are cast back to bf16 right before the MXU dot.)
    _, Cin, H, W = x_ref.shape
    K = w_ref.shape[0]
    _, Cout, OH, OW = o_ref.shape
    PH = xs_ref.shape[0]
    pad = (PH - H) // 2

    # In-kernel zero padding: zero the scratch once per step, then drop each
    # channel plane into its lane slot (replaces an HBM jnp.pad round trip).
    xs_ref[...] = jnp.zeros(xs_ref.shape, xs_ref.dtype)
    for ci in range(Cin):                                  # static unroll
        xs_ref[pad:pad + H, ci * W:(ci + 1) * W] = (
            x_ref[0, ci, :, :].astype(xs_ref.dtype))

    # K banded matmuls, bf16 x bf16 -> f32 accumulate.  Weights and bias are
    # loaded once; there is no per-output-row loop at all.
    acc = jnp.broadcast_to(b_ref[...], (OH, Cout * OW)).astype(jnp.float32)
    for kh in range(K):                                    # static unroll
        lhs = xs_ref[kh:kh + OH, :].astype(jnp.bfloat16)   # (OH, Cin*W)
        acc = acc + jnp.dot(lhs, w_ref[kh],
                            preferred_element_type=jnp.float32)

    # Single pass over the register accumulator: write NCHW planes directly,
    # so the whole output block is produced once per batch element.
    for co in range(Cout):                                 # static unroll
        o_ref[0, co, :, :] = acc[:, co * OW:(co + 1) * OW].astype(o_ref.dtype)


def conv_transpose2d_pallas(x_nchw, weight_eff, bias_eff, stride=1, padding=0):
    # TODO(synk): stride>1 / groups>1 paths of the module are not implemented
    # (module defaults are stride=1, groups=1).
    assert stride == 1, "kernel implements the module's default stride=1"
    N, Cin, H, W = x_nchw.shape
    cin_w, Cout, K, K2 = weight_eff.shape
    assert cin_w == Cin and K == K2
    pad = K - 1 - padding
    assert pad >= 0

    OH = (H - 1) * stride - 2 * padding + K
    OW = (W - 1) * stride - 2 * padding + K
    PH = H + 2 * pad

    # Banded weight, built exactly (numpy):
    #   band[kh, ci*W + iw, co*OW + ow] = wflip[ci, co, kh, kw]
    # with iw = ow + kw - pad (in-range entries only), where wflip is the
    # spatially flipped transposed-conv weight.  This folds the kw loop and
    # the Cin contraction into a single MXU contraction of size Cin*W.
    wflip = np.asarray(weight_eff, dtype=np.float32)[:, :, ::-1, ::-1]
    kw_i = np.arange(K)[:, None, None]
    iw_i = np.arange(W)[None, :, None]
    ow_i = np.arange(OW)[None, None, :]
    sel = (iw_i == ow_i + kw_i - pad).astype(np.float32)          # (K, W, OW)
    band_np = np.einsum('ichw,wvo->hivco', wflip, sel)
    band = jnp.asarray(band_np.reshape(K, Cin * W, Cout * OW), jnp.bfloat16)

    b_row = jnp.repeat(bias_eff.astype(jnp.float32), OW).reshape(1, Cout * OW)
    x_bf16 = x_nchw.astype(jnp.bfloat16)

    flops = 2 * N * K * OH * (Cin * W) * (Cout * OW)
    bytes_accessed = (N * Cin * H * W * 2 + band.size * 2
                      + Cout * OW * 4 + N * Cout * OH * OW * 4)

    return pl.pallas_call(
        _convt_banded_kernel,
        out_shape=jax.ShapeDtypeStruct((N, Cout, OH, OW), jnp.float32),
        grid_spec=pltpu.PrefetchScalarGridSpec(
            num_scalar_prefetch=0,
            # TODO(synk): for large images add a second parallel OH-tile axis
            # (grid=(N, cdiv(OH, TH)) with overlapping input index_map) to
            # bound VMEM and keep both v7x TensorCores busy when N is small.
            grid=(N,),
            in_specs=[
                pl.BlockSpec((1, Cin, H, W), lambda n: (n, 0, 0, 0)),
                pl.BlockSpec((K, Cin * W, Cout * OW), lambda n: (0, 0, 0)),
                pl.BlockSpec((1, Cout * OW), lambda n: (0, 0)),
            ],
            out_specs=pl.BlockSpec((1, Cout, OH, OW), lambda n: (n, 0, 0, 0)),
            scratch_shapes=[pltpu.VMEM((PH, Cin * W), jnp.float32)],
        ),
        compiler_params=pltpu.CompilerParams(
            dimension_semantics=("parallel",),
            vmem_limit_bytes=32 * 1024 * 1024),
        cost_estimate=pl.CostEstimate(flops=flops, transcendentals=0,
                                      bytes_accessed=bytes_accessed),
    )(x_bf16, band, b_row)


# ----------------------------------------------------------------------------
# Independent reference (direct scatter definition of conv_transpose2d),
# used only for a correctness check.
# ----------------------------------------------------------------------------
def conv_transpose2d_ref(x, w, b, padding=0):
    N, Cin, H, W = x.shape
    _, Cout, K, _ = w.shape
    OHp, OWp = H - 1 + K, W - 1 + K
    out = jnp.zeros((N, Cout, OHp, OWp), jnp.float32)
    for kh in range(K):
        for kw in range(K):
            contrib = jnp.einsum('nchw,cd->ndhw', x, w[:, :, kh, kw])
            out = out.at[:, :, kh:kh + H, kw:kw + W].add(contrib)
    if padding > 0:
        out = out[:, :, padding:-padding, padding:-padding]
    return out + b[None, :, None, None]


if __name__ == "__main__":
    # small shapes consistent with the module: batch=2, in=4, out=8, 16x16, k=3
    N, Cin, Cout, H, W, K = 2, 4, 8, 16, 16, 3
    stride, padding, groups, minrate, droprate = 1, 0, 1, 0.1, 0.001

    key = jax.random.PRNGKey(0)
    kx, kw, kb = jax.random.split(key, 3)
    x = jax.random.normal(kx, (N, Cin, H, W), jnp.float32)
    weight = 0.1 * jax.random.normal(kw, (Cin, Cout // groups, K, K), jnp.float32)
    bias = 0.1 * jax.random.normal(kb, (Cout,), jnp.float32)

    # module buffers / state (first forward call)
    zmat = zidx_to_int(get_zidx_4d((Cin, Cout // groups, K, K)))
    idrop = np.ones((Cin, Cout // groups, K, K), np.float32)
    bmat = np.ones((Cout,), np.float32)
    numel = zmat.size
    minnum = max(round(Cout * Cin * K * K * minrate // groups), 31)
    dropcnt = numel                                     # initial state

    weight_eff, bias_eff = prepare_effective_params(
        weight, bias, zmat, idrop, bmat, dropcnt, minnum)

    out = conv_transpose2d_pallas(x, weight_eff, bias_eff,
                                  stride=stride, padding=padding)
    out = jax.block_until_ready(out)

    # reference computed from identically bf16-rounded operands (the kernel
    # uses bf16 inputs/weights with f32 accumulation)
    x_q = x.astype(jnp.bfloat16).astype(jnp.float32)
    w_q = weight_eff.astype(jnp.bfloat16).astype(jnp.float32)
    ref = conv_transpose2d_ref(x_q, w_q, bias_eff, padding=padding)
    ref = jax.block_until_ready(ref)

    OH = (H - 1) * stride - 2 * padding + K
    OW = (W - 1) * stride - 2 * padding + K
    assert out.shape == (N, Cout, OH, OW)
    np.testing.assert_allclose(np.asarray(out), np.asarray(ref),
                               rtol=2e-3, atol=2e-3)
    print("KERNEL_OK")
</pallas_src>

<mosaic_0001>
module attributes {stable_mosaic.version = 11 : i64} {
  func.func @_convt_banded_kernel(%arg0: i32, %arg1: memref<1x4x16x16xbf16, #tpu.memory_space<vmem>>, %arg2: memref<3x64x144xbf16, #tpu.memory_space<vmem>>, %arg3: memref<1x144xf32, #tpu.memory_space<vmem>>, %arg4: memref<1x8x18x18xf32, #tpu.memory_space<vmem>>, %arg5: memref<20x64xf32, #tpu.memory_space<vmem>>) attributes {dimension_semantics = [#tpu.dimension_semantics<parallel>], iteration_bounds = array<i64: 2>, scalar_prefetch = 0 : i64, scratch_operands = 1 : i64, tpu.core_type = #tpu.core_type<tc>, window_params = [{transform_indices = @transform_0, window_bounds = array<i64: 1, 4, 16, 16>}, {pipeline_mode = #tpu.pipeline_mode<synchronous>, transform_indices = @transform_1, window_bounds = array<i64: 3, 64, 144>}, {pipeline_mode = #tpu.pipeline_mode<synchronous>, transform_indices = @transform_2, window_bounds = array<i64: 1, 144>}, {transform_indices = @transform_3, window_bounds = array<i64: 1, 8, 18, 18>}]} {
    %cst = arith.constant 0.000000e+00 : f32
    %0 = vector.broadcast %cst : f32 to vector<20x64xf32>
    %c0 = arith.constant 0 : index
    %c0_0 = arith.constant 0 : index
    %1 = vector.load %arg5[%c0, %c0_0] : memref<20x64xf32, #tpu.memory_space<vmem>>, vector<20x64xf32>
    tpu.vector_store %arg5[%c0, %c0_0], %0 {strides = array<i32>} : memref<20x64xf32, #tpu.memory_space<vmem>>, vector<20x64xf32>,
    %c0_1 = arith.constant 0 : index
    %c0_2 = arith.constant 0 : index
    %c0_3 = arith.constant 0 : index
    %c0_4 = arith.constant 0 : index
    %2 = vector.load %arg1[%c0_1, %c0_2, %c0_3, %c0_4] : memref<1x4x16x16xbf16, #tpu.memory_space<vmem>>, vector<1x1x16x16xbf16>
    %3 = vector.shape_cast %2 : vector<1x1x16x16xbf16> to vector<16x16xbf16>
    %4 = arith.extf %3 : vector<16x16xbf16> to vector<16x16xf32>
    %c2 = arith.constant 2 : index
    %c0_5 = arith.constant 0 : index
    %5 = vector.load %arg5[%c2, %c0_5] : memref<20x64xf32, #tpu.memory_space<vmem>>, vector<16x16xf32>
    tpu.vector_store %arg5[%c2, %c0_5], %4 {strides = array<i32>} : memref<20x64xf32, #tpu.memory_space<vmem>>, vector<16x16xf32>,
    %c0_6 = arith.constant 0 : index
    %c1 = arith.constant 1 : index
    %c0_7 = arith.constant 0 : index
    %c0_8 = arith.constant 0 : index
    %6 = vector.load %arg1[%c0_6, %c1, %c0_7, %c0_8] : memref<1x4x16x16xbf16, #tpu.memory_space<vmem>>, vector<1x1x16x16xbf16>
    %7 = vector.shape_cast %6 : vector<1x1x16x16xbf16> to vector<16x16xbf16>
    %8 = arith.extf %7 : vector<16x16xbf16> to vector<16x16xf32>
    %c2_9 = arith.constant 2 : index
    %c16 = arith.constant 16 : index
    %9 = vector.load %arg5[%c2_9, %c16] : memref<20x64xf32, #tpu.memory_space<vmem>>, vector<16x16xf32>
    tpu.vector_store %arg5[%c2_9, %c16], %8 {strides = array<i32>} : memref<20x64xf32, #tpu.memory_space<vmem>>, vector<16x16xf32>,
    %c0_10 = arith.constant 0 : index
    %c2_11 = arith.constant 2 : index
    %c0_12 = arith.constant 0 : index
    %c0_13 = arith.constant 0 : index
    %10 = vector.load %arg1[%c0_10, %c2_11, %c0_12, %c0_13] : memref<1x4x16x16xbf16, #tpu.memory_space<vmem>>, vector<1x1x16x16xbf16>
    %11 = vector.shape_cast %10 : vector<1x1x16x16xbf16> to vector<16x16xbf16>
    %12 = arith.extf %11 : vector<16x16xbf16> to vector<16x16xf32>
    %c2_14 = arith.constant 2 : index
    %c32 = arith.constant 32 : index
    %13 = vector.load %arg5[%c2_14, %c32] : memref<20x64xf32, #tpu.memory_space<vmem>>, vector<16x16xf32>
    tpu.vector_store %arg5[%c2_14, %c32], %12 {strides = array<i32>} : memref<20x64xf32, #tpu.memory_space<vmem>>, vector<16x16xf32>,
    %c0_15 = arith.constant 0 : index
    %c3 = arith.constant 3 : index
    %c0_16 = arith.constant 0 : index
    %c0_17 = arith.constant 0 : index
    %14 = vector.load %arg1[%c0_15, %c3, %c0_16, %c0_17] : memref<1x4x16x16xbf16, #tpu.memory_space<vmem>>, vector<1x1x16x16xbf16>
    %15 = vector.shape_cast %14 : vector<1x1x16x16xbf16> to vector<16x16xbf16>
    %16 = arith.extf %15 : vector<16x16xbf16> to vector<16x16xf32>
    %c2_18 = arith.constant 2 : index
    %c48 = arith.constant 48 : index
    %17 = vector.load %arg5[%c2_18, %c48] : memref<20x64xf32, #tpu.memory_space<vmem>>, vector<16x16xf32>
    tpu.vector_store %arg5[%c2_18, %c48], %16 {strides = array<i32>} : memref<20x64xf32, #tpu.memory_space<vmem>>, vector<16x16xf32>,
    %c0_19 = arith.constant 0 : index
    %c0_20 = arith.constant 0 : index
    %18 = vector.load %arg3[%c0_19, %c0_20] : memref<1x144xf32, #tpu.memory_space<vmem>>, vector<1x144xf32>
    %19 = vector.shape_cast %18 : vector<1x144xf32> to vector<1x144xf32>
    %20 = vector.broadcast %19 : vector<1x144xf32> to vector<18x144xf32>
    %c0_21 = arith.constant 0 : index
    %c0_22 = arith.constant 0 : index
    %21 = vector.load %arg5[%c0_21, %c0_22] : memref<20x64xf32, #tpu.memory_space<vmem>>, vector<18x64xf32>
    %22 = arith.truncf %21 : vector<18x64xf32> to vector<18x64xbf16>
    %c0_23 = arith.constant 0 : index
    %c0_24 = arith.constant 0 : index
    %c0_25 = arith.constant 0 : index
    %23 = vector.load %arg2[%c0_23, %c0_24, %c0_25] : memref<3x64x144xbf16, #tpu.memory_space<vmem>>, vector<1x64x144xbf16>
    %24 = vector.shape_cast %23 : vector<1x64x144xbf16> to vector<64x144xbf16>
    %cst_26 = arith.constant dense<0.000000e+00> : vector<18x144xf32>
    %25 = tpu.matmul %22, %24, %cst_26 {dimension_numbers = #tpu.dot_dimension_numbers<[1], [0], [0], [1], [0, 0, 1, 1], [], []>} : vector<18x64xbf16>, vector<64x144xbf16>, vector<18x144xf32> -> vector<18x144xf32>
    %26 = arith.addf %20, %25 : vector<18x144xf32>
    %c1_27 = arith.constant 1 : index
    %c0_28 = arith.constant 0 : index
    %27 = vector.load %arg5[%c1_27, %c0_28] : memref<20x64xf32, #tpu.memory_space<vmem>>, vector<18x64xf32>
    %28 = arith.truncf %27 : vector<18x64xf32> to vector<18x64xbf16>
    %c1_29 = arith.constant 1 : index
    %c0_30 = arith.constant 0 : index
    %c0_31 = arith.constant 0 : index
    %29 = vector.load %arg2[%c1_29, %c0_30, %c0_31] : memref<3x64x144xbf16, #tpu.memory_space<vmem>>, vector<1x64x144xbf16>
    %30 = vector.shape_cast %29 : vector<1x64x144xbf16> to vector<64x144xbf16>
    %cst_32 = arith.constant dense<0.000000e+00> : vector<18x144xf32>
    %31 = tpu.matmul %28, %30, %cst_32 {dimension_numbers = #tpu.dot_dimension_numbers<[1], [0], [0], [1], [0, 0, 1, 1], [], []>} : vector<18x64xbf16>, vector<64x144xbf16>, vector<18x144xf32> -> vector<18x144xf32>
    %32 = arith.addf %26, %31 : vector<18x144xf32>
    %c2_33 = arith.constant 2 : index
    %c0_34 = arith.constant 0 : index
    %33 = vector.load %arg5[%c2_33, %c0_34] : memref<20x64xf32, #tpu.memory_space<vmem>>, vector<18x64xf32>
    %34 = arith.truncf %33 : vector<18x64xf32> to vector<18x64xbf16>
    %c2_35 = arith.constant 2 : index
    %c0_36 = arith.constant 0 : index
    %c0_37 = arith.constant 0 : index
    %35 = vector.load %arg2[%c2_35, %c0_36, %c0_37] : memref<3x64x144xbf16, #tpu.memory_space<vmem>>, vector<1x64x144xbf16>
    %36 = vector.shape_cast %35 : vector<1x64x144xbf16> to vector<64x144xbf16>
    %cst_38 = arith.constant dense<0.000000e+00> : vector<18x144xf32>
    %37 = tpu.matmul %34, %36, %cst_38 {dimension_numbers = #tpu.dot_dimension_numbers<[1], [0], [0], [1], [0, 0, 1, 1], [], []>} : vector<18x64xbf16>, vector<64x144xbf16>, vector<18x144xf32> -> vector<18x144xf32>
    %38 = arith.addf %32, %37 : vector<18x144xf32>
    %39 = vector.extract_strided_slice %38 {offsets = [0, 0], sizes = [18, 18], strides = [1, 1]} : vector<18x144xf32> to vector<18x18xf32>
    %c0_39 = arith.constant 0 : index
    %c0_40 = arith.constant 0 : index
    %c0_41 = arith.constant 0 : index
    %c0_42 = arith.constant 0 : index
    %40 = vector.load %arg4[%c0_39, %c0_40, %c0_41, %c0_42] : memref<1x8x18x18xf32, #tpu.memory_space<vmem>>, vector<1x1x18x18xf32>
    %41 = vector.shape_cast %40 : vector<1x1x18x18xf32> to vector<18x18xf32>
    %42 = vector.shape_cast %39 : vector<18x18xf32> to vector<1x1x18x18xf32>
    tpu.vector_store %arg4[%c0_39, %c0_40, %c0_41, %c0_42], %42 {strides = array<i32>} : memref<1x8x18x18xf32, #tpu.memory_space<vmem>>, vector<1x1x18x18xf32>,
    %43 = vector.extract_strided_slice %38 {offsets = [0, 18], sizes = [18, 18], strides = [1, 1]} : vector<18x144xf32> to vector<18x18xf32>
    %c0_43 = arith.constant 0 : index
    %c1_44 = arith.constant 1 : index
    %c0_45 = arith.constant 0 : index
    %c0_46 = arith.constant 0 : index
    %44 = vector.load %arg4[%c0_43, %c1_44, %c0_45, %c0_46] : memref<1x8x18x18xf32, #tpu.memory_space<vmem>>, vector<1x1x18x18xf32>
    %45 = vector.shape_cast %44 : vector<1x1x18x18xf32> to vector<18x18xf32>
    %46 = vector.shape_cast %43 : vector<18x18xf32> to vector<1x1x18x18xf32>
    tpu.vector_store %arg4[%c0_43, %c1_44, %c0_45, %c0_46], %46 {strides = array<i32>} : memref<1x8x18x18xf32, #tpu.memory_space<vmem>>, vector<1x1x18x18xf32>,
    %47 = vector.extract_strided_slice %38 {offsets = [0, 36], sizes = [18, 18], strides = [1, 1]} : vector<18x144xf32> to vector<18x18xf32>
    %c0_47 = arith.constant 0 : index
    %c2_48 = arith.constant 2 : index
    %c0_49 = arith.constant 0 : index
    %c0_50 = arith.constant 0 : index
    %48 = vector.load %arg4[%c0_47, %c2_48, %c0_49, %c0_50] : memref<1x8x18x18xf32, #tpu.memory_space<vmem>>, vector<1x1x18x18xf32>
    %49 = vector.shape_cast %48 : vector<1x1x18x18xf32> to vector<18x18xf32>
    %50 = vector.shape_cast %47 : vector<18x18xf32> to vector<1x1x18x18xf32>
    tpu.vector_store %arg4[%c0_47, %c2_48, %c0_49, %c0_50], %50 {strides = array<i32>} : memref<1x8x18x18xf32, #tpu.memory_space<vmem>>, vector<1x1x18x18xf32>,
    %51 = vector.extract_strided_slice %38 {offsets = [0, 54], sizes = [18, 18], strides = [1, 1]} : vector<18x144xf32> to vector<18x18xf32>
    %c0_51 = arith.constant 0 : index
    %c3_52 = arith.constant 3 : index
    %c0_53 = arith.constant 0 : index
    %c0_54 = arith.constant 0 : index
    %52 = vector.load %arg4[%c0_51, %c3_52, %c0_53, %c0_54] : memref<1x8x18x18xf32, #tpu.memory_space<vmem>>, vector<1x1x18x18xf32>
    %53 = vector.shape_cast %52 : vector<1x1x18x18xf32> to vector<18x18xf32>
    %54 = vector.shape_cast %51 : vector<18x18xf32> to vector<1x1x18x18xf32>
    tpu.vector_store %arg4[%c0_51, %c3_52, %c0_53, %c0_54], %54 {strides = array<i32>} : memref<1x8x18x18xf32, #tpu.memory_space<vmem>>, vector<1x1x18x18xf32>,
    %55 = vector.extract_strided_slice %38 {offsets = [0, 72], sizes = [18, 18], strides = [1, 1]} : vector<18x144xf32> to vector<18x18xf32>
    %c0_55 = arith.constant 0 : index
    %c4 = arith.constant 4 : index
    %c0_56 = arith.constant 0 : index
    %c0_57 = arith.constant 0 : index
    %56 = vector.load %arg4[%c0_55, %c4, %c0_56, %c0_57] : memref<1x8x18x18xf32, #tpu.memory_space<vmem>>, vector<1x1x18x18xf32>
    %57 = vector.shape_cast %56 : vector<1x1x18x18xf32> to vector<18x18xf32>
    %58 = vector.shape_cast %55 : vector<18x18xf32> to vector<1x1x18x18xf32>
    tpu.vector_store %arg4[%c0_55, %c4, %c0_56, %c0_57], %58 {strides = array<i32>} : memref<1x8x18x18xf32, #tpu.memory_space<vmem>>, vector<1x1x18x18xf32>,
    %59 = vector.extract_strided_slice %38 {offsets = [0, 90], sizes = [18, 18], strides = [1, 1]} : vector<18x144xf32> to vector<18x18xf32>
    %c0_58 = arith.constant 0 : index
    %c5 = arith.constant 5 : index
    %c0_59 = arith.constant 0 : index
    %c0_60 = arith.constant 0 : index
    %60 = vector.load %arg4[%c0_58, %c5, %c0_59, %c0_60] : memref<1x8x18x18xf32, #tpu.memory_space<vmem>>, vector<1x1x18x18xf32>
    %61 = vector.shape_cast %60 : vector<1x1x18x18xf32> to vector<18x18xf32>
    %62 = vector.shape_cast %59 : vector<18x18xf32> to vector<1x1x18x18xf32>
    tpu.vector_store %arg4[%c0_58, %c5, %c0_59, %c0_60], %62 {strides = array<i32>} : memref<1x8x18x18xf32, #tpu.memory_space<vmem>>, vector<1x1x18x18xf32>,
    %63 = vector.extract_strided_slice %38 {offsets = [0, 108], sizes = [18, 18], strides = [1, 1]} : vector<18x144xf32> to vector<18x18xf32>
    %c0_61 = arith.constant 0 : index
    %c6 = arith.constant 6 : index
    %c0_62 = arith.constant 0 : index
    %c0_63 = arith.constant 0 : index
    %64 = vector.load %arg4[%c0_61, %c6, %c0_62, %c0_63] : memref<1x8x18x18xf32, #tpu.memory_space<vmem>>, vector<1x1x18x18xf32>
    %65 = vector.shape_cast %64 : vector<1x1x18x18xf32> to vector<18x18xf32>
    %66 = vector.shape_cast %63 : vector<18x18xf32> to vector<1x1x18x18xf32>
    tpu.vector_store %arg4[%c0_61, %c6, %c0_62, %c0_63], %66 {strides = array<i32>} : memref<1x8x18x18xf32, #tpu.memory_space<vmem>>, vector<1x1x18x18xf32>,
    %67 = vector.extract_strided_slice %38 {offsets = [0, 126], sizes = [18, 18], strides = [1, 1]} : vector<18x144xf32> to vector<18x18xf32>
    %c0_64 = arith.constant 0 : index
    %c7 = arith.constant 7 : index
    %c0_65 = arith.constant 0 : index
    %c0_66 = arith.constant 0 : index
    %68 = vector.load %arg4[%c0_64, %c7, %c0_65, %c0_66] : memref<1x8x18x18xf32, #tpu.memory_space<vmem>>, vector<1x1x18x18xf32>
    %69 = vector.shape_cast %68 : vector<1x1x18x18xf32> to vector<18x18xf32>
    %70 = vector.shape_cast %67 : vector<18x18xf32> to vector<1x1x18x18xf32>
    tpu.vector_store %arg4[%c0_64, %c7, %c0_65, %c0_66], %70 {strides = array<i32>} : memref<1x8x18x18xf32, #tpu.memory_space<vmem>>, vector<1x1x18x18xf32>,
    return
  }
  func.func @transform_0(%arg0: i32) -> (i32, i32, i32, i32) {
    %c0_i32 = arith.constant 0 : i32
    %c0_i32_0 = arith.constant 0 : i32
    %c0_i32_1 = arith.constant 0 : i32
    %c0_i32_2 = arith.constant 0 : i32
    return %arg0, %c0_i32, %c0_i32_0, %c0_i32_1 : i32, i32, i32, i32
  }
  func.func @transform_1(%arg0: i32) -> (i32, i32, i32) {
    %c0_i32 = arith.constant 0 : i32
    %c0_i32_0 = arith.constant 0 : i32
    %c0_i32_1 = arith.constant 0 : i32
    %c0_i32_2 = arith.constant 0 : i32
    return %c0_i32, %c0_i32_0, %c0_i32_1 : i32, i32, i32
  }
  func.func @transform_2(%arg0: i32) -> (i32, i32) {
    %c0_i32 = arith.constant 0 : i32
    %c0_i32_0 = arith.constant 0 : i32
    %c0_i32_1 = arith.constant 0 : i32
    return %c0_i32, %c0_i32_0 : i32, i32
  }
  func.func @transform_3(%arg0: i32) -> (i32, i32, i32, i32) {
    %c0_i32 = arith.constant 0 : i32
    %c0_i32_0 = arith.constant 0 : i32
    %c0_i32_1 = arith.constant 0 : i32
    %c0_i32_2 = arith.constant 0 : i32
    return %arg0, %c0_i32, %c0_i32_0, %c0_i32_1 : i32, i32, i32, i32
  }
}

</mosaic_0001>

<llo_original>
// kernel: tpu_custom_call.1
$region0: #{tpu_custom_call.1}
  #allocation0 [shape = 'u32[]', space=smem, size = 0x4, offset = 0x4, fixed_abs, tag = 'smem constant byte address 0x4 - core index']
  #allocation1 [shape = 'u32[144,128]{1,0:T(1,128)}', space=vmem, size = 0x12000, scoped, tag = 'internal scratch']
  #allocation2 [shape = 'f32[20,64]{1,0:T(8,128)}', space=vmem, size = 0x3000, scoped, tag = 'scratch operand']
  %s0 = inlined_call_operand.hbm [shape: bf16[2,4,16,16], index: 0, kind: input, shape index: {}]
  %s1 = inlined_call_operand.hbm [shape: bf16[3,64,144], index: 1, kind: input, shape index: {}]
  %s2 = inlined_call_operand.vmem [shape: f32[1,144], index: 2, kind: input, shape index: {}]
  %s3 = inlined_call_operand.vmem [shape: f32[2,8,18,18], index: 3, kind: output, shape index: {}]
  %s4 = sld [smem:[#allocation0]]
  $region53: #{tpu_custom_call.1} parent=0
    _
  %s6 = ssub.s32 1, %s4
  %s7 = scalar_select 0, %s6, %s4
  $region1: #{tpu_custom_call.1} parent=0
    #allocation3 [shape = 'u8[32768]{0}', space=vmem, size = 0x8000, scoped, tag = 'input window, operand 0']
    #allocation4 [shape = 's32[2]{0}', space=sflag, size = 0x8, scoped, tag = 'scoped memory for tpu_custom_call.1']
    #allocation5 [shape = 'u8[98304]{0}', space=vmem, size = 0x18000, scoped, tag = 'input window, operand 1, single buffered']
    #allocation6 [shape = 's32[1]{0}', space=sflag, size = 0x4, scoped, tag = 'scoped memory for tpu_custom_call.1']
    %8 = vsyncpa [#allocation4], 0
    %s9 = scalar_lea.sflag [#allocation4], 1
    %10 = vsyncpa %s9, 0
    %11 = vsyncpa [#allocation6], 0
    loop: start=0, step=1, limit=4
    $region2: #{tpu_custom_call.1} parent=1 // loop_pre_header
      _
    $region3: #{tpu_custom_call.1} parent=1 // loop_header
      %s13 = sphi 0, %s17
      %p14 = scmp.ge.s32.totalorder %s13, 4
      %s23 = sphi 0, %s25
      %s26 = sphi 0, %s23
      %s27 = sphi 0, %s26
      %s43 = sphi 0, %s27
      %s47 = sphi 0, %s47
      %s49 = sphi 0, %s47
      %s50 = sphi 0, %s49
      %s64 = sphi 0, %s50
      %s68 = sphi 0, %s68
      %s70 = sphi 0, %s68
      %s71 = sphi 0, %s70
      %s85 = sphi 0, %s71
      %s91 = sphi 0, %s93
      %s94 = sphi 0, %s91
      %s95 = sphi 0, %s94
      %s111 = sphi 0, %s95
    $region4: #{tpu_custom_call.1} parent=1 // loop_header_branch
      %16 = sbr.rel (%p14) target = $region8
    $region5: #{tpu_custom_call.1} parent=1 // loop_body
      %s18 = ssub.s32 %s13, 1
      %s19 = ssub.s32 %s13, 2
      %s20 = sadd.s32 %s13, 1
      %s21 = ssub.s32 %s13, %s20
      %p22 = scmp.eq.s32.totalorder %s21, 0
      %s24 = sadd.s32 %s23, 1
      %s25 = scalar_select %p22, %s23, %s24
      %p28 = pneg %p22
      %p29 = scmp.eq.s32.totalorder %s13, 1
      %p30 = por %p28, %p29
      %p31 = scmp.ne.s32.totalorder %s23, %s26
      %p32 = scmp.eq.s32.totalorder %s13, 0
      %p33 = por %p31, %p32
      %p34 = scmp.ne.s32.totalorder %s23, %s26
      %p35 = scmp.eq.s32.totalorder %s18, 1
      %p36 = por %p34, %p35
      %p37 = scmp.ne.s32.totalorder %s26, %s27
      %p38 = scmp.eq.s32.totalorder %s18, 0
      %p39 = por %p37, %p38
      %p40 = scmp.ne.s32.totalorder %s26, %s27
      %p41 = scmp.eq.s32.totalorder %s19, 1
      %p42 = por %p40, %p41
      %p44 = scmp.ne.s32.totalorder %s27, %s43
      %p45 = scmp.eq.s32.totalorder %s19, 0
      %p46 = por %p44, %p45
      %s48 = sadd.s32 %s47, 1
      %p51 = scmp.eq.s32.totalorder %s13, 1
      %p52 = scmp.ne.s32.totalorder %s47, %s49
      %p53 = scmp.eq.s32.totalorder %s13, 0
      %p54 = por %p52, %p53
      %p55 = scmp.ne.s32.totalorder %s47, %s49
      %p56 = scmp.eq.s32.totalorder %s18, 1
      %p57 = por %p55, %p56
      %p58 = scmp.ne.s32.totalorder %s49, %s50
      %p59 = scmp.eq.s32.totalorder %s18, 0
      %p60 = por %p58, %p59
      %p61 = scmp.ne.s32.totalorder %s49, %s50
      %p62 = scmp.eq.s32.totalorder %s19, 1
      %p63 = por %p61, %p62
      %p65 = scmp.ne.s32.totalorder %s50, %s64
      %p66 = scmp.eq.s32.totalorder %s19, 0
      %p67 = por %p65, %p66
      %s69 = sadd.s32 %s68, 1
      %p72 = scmp.eq.s32.totalorder %s13, 1
      %p73 = scmp.ne.s32.totalorder %s68, %s70
      %p74 = scmp.eq.s32.totalorder %s13, 0
      %p75 = por %p73, %p74
      %p76 = scmp.ne.s32.totalorder %s68, %s70
      %p77 = scmp.eq.s32.totalorder %s18, 1
      %p78 = por %p76, %p77
      %p79 = scmp.ne.s32.totalorder %s70, %s71
      %p80 = scmp.eq.s32.totalorder %s18, 0
      %p81 = por %p79, %p80
      %p82 = scmp.ne.s32.totalorder %s70, %s71
      %p83 = scmp.eq.s32.totalorder %s19, 1
      %p84 = por %p82, %p83
      %p86 = scmp.ne.s32.totalorder %s71, %s85
      %p87 = scmp.eq.s32.totalorder %s19, 0
      %p88 = por %p86, %p87
      %s89 = ssub.s32 %s13, %s20
      %p90 = scmp.eq.s32.totalorder %s89, 0
      %s92 = sadd.s32 %s91, 1
      %s93 = scalar_select %p90, %s91, %s92
      %p96 = pneg %p90
      %p97 = scmp.eq.s32.totalorder %s13, 1
      %p98 = por %p96, %p97
      %p99 = scmp.ne.s32.totalorder %s91, %s94
      %p100 = scmp.eq.s32.totalorder %s13, 0
      %p101 = por %p99, %p100
      %p102 = scmp.ne.s32.totalorder %s91, %s94
      %p103 = scmp.eq.s32.totalorder %s18, 1
      %p104 = por %p102, %p103
      %p105 = scmp.ne.s32.totalorder %s94, %s95
      %p106 = scmp.eq.s32.totalorder %s18, 0
      %p107 = por %p105, %p106
      %p108 = scmp.ne.s32.totalorder %s94, %s95
      %p109 = scmp.eq.s32.totalorder %s19, 1
      %p110 = por %p108, %p109
      %p112 = scmp.ne.s32.totalorder %s95, %s111
      %p113 = scmp.eq.s32.totalorder %s19, 0
      %p114 = por %p112, %p113
      %p115 = scmp.le.s32.totalorder 1, %s13
      %p116 = scmp.lt.s32.totalorder %s13, 3
      %p117 = pnand %p115, %p116
      %p118 = pneg %p117
      // Predicated region
      $region9: #{tpu_custom_call.1} parent=5 // pred_check
        _
      $region10: #{tpu_custom_call.1} parent=5 // pred_check_branch
        %120 = sbr.rel (%p117) target = $region12
      $region11: #{tpu_custom_call.1} parent=5 // pred_region
        %s121 = ssub.s32 %s13, 1
        // Predicated region
        $region13: #{tpu_custom_call.1} parent=11 // pred_check
          %p122 = pneg %p60
        $region14: #{tpu_custom_call.1} parent=11 // pred_check_branch
          %124 = sbr.rel (%p122) target = $region16
        $region15: #{tpu_custom_call.1} parent=11 // pred_region
          %s126 = ssub.s32 3072, 3072
          %127 = vsyncadd [#allocation6], %s126
          %s128 = sshll.u32 [#allocation5], 4
          %s129 = int_to_ptr.vmem [resolvable:$true] %s128
          %134 = dma.hbm_to_vmem [thread:$0]  %s1, 3072, %s129, [#allocation6], 128, 128, 8
        $region16: #{tpu_custom_call.1} parent=11 // pred_fallthru
          _
        // Predicated region
        $region17: #{tpu_custom_call.1} parent=11 // pred_check
          %p135 = pneg %p81
        $region18: #{tpu_custom_call.1} parent=11 // pred_check_branch
          %137 = sbr.rel (%p135) target = $region20
        $region19: #{tpu_custom_call.1} parent=11 // pred_region
          _
        $region20: #{tpu_custom_call.1} parent=11 // pred_fallthru
          _
      $region12: #{tpu_custom_call.1} parent=5 // pred_fallthru
        _
      %p138 = scmp.lt.s32.totalorder %s13, 2
      // Predicated region
      $region21: #{tpu_custom_call.1} parent=5 // pred_check
        %p139 = pneg %p138
      $region22: #{tpu_custom_call.1} parent=5 // pred_check_branch
        %141 = sbr.rel (%p139) target = $region24
      $region23: #{tpu_custom_call.1} parent=5 // pred_region
        // Predicated region
        $region25: #{tpu_custom_call.1} parent=23 // pred_check
          %p142 = pneg %p33
        $region26: #{tpu_custom_call.1} parent=23 // pred_check_branch
          %144 = sbr.rel (%p142) target = $region28
        $region27: #{tpu_custom_call.1} parent=23 // pred_region
          %s145 = sand.u32 %s23, 1
          %s146 = scalar_lea.sflag [#allocation4], %s145
          %s147 = sand.u32 %s23, 1
          %s148 = smul.addr %s147, 32
          %s149 = scalar_lea.vmem [#allocation3], %s148
          %s151 = ssub.s32 512, 512
          %152 = vsyncadd %s146, %s151
          %s153 = smul.addr %s13, 8
          %s154 = smul.addr %s153, 64
          %s155 = scalar_lea.hbm %s0, %s154
          %s156 = sshll.u32 %s149, 4
          %s157 = int_to_ptr.vmem [resolvable:$true] %s156
          %162 = dma.hbm_to_vmem [thread:$0]  %s155, 512, %s157, %s146, 64, 64, 4
        $region28: #{tpu_custom_call.1} parent=23 // pred_fallthru
          _
      $region24: #{tpu_custom_call.1} parent=5 // pred_fallthru
        _
      %p163 = scmp.le.s32.totalorder 1, %s13
      %p164 = scmp.lt.s32.totalorder %s13, 3
      %p165 = pnand %p163, %p164
      %p166 = pneg %p165
      // Predicated region
      $region29: #{tpu_custom_call.1} parent=5 // pred_check
        _
      $region30: #{tpu_custom_call.1} parent=5 // pred_check_branch
        %168 = sbr.rel (%p165) target = $region32
      $region31: #{tpu_custom_call.1} parent=5 // pred_region
        %s169 = ssub.s32 %s13, 1
        %s170 = sand.u32 %s26, 1
        %s171 = scalar_lea.sflag [#allocation4], %s170
        %s172 = sand.u32 %s26, 1
        %s173 = smul.addr %s172, 32
        %s174 = scalar_lea.vmem [#allocation3], %s173
        // Predicated region
        $region33: #{tpu_custom_call.1} parent=31 // pred_check
          %p175 = pneg %p39
        $region34: #{tpu_custom_call.1} parent=31 // pred_check_branch
          %177 = sbr.rel (%p175) target = $region36
        $region35: #{tpu_custom_call.1} parent=31 // pred_region
          %178 = dma.done %s171, 512
        $region36: #{tpu_custom_call.1} parent=31 // pred_fallthru
          _
        // Predicated region
        $region37: #{tpu_custom_call.1} parent=31 // pred_check
          %p179 = pneg %p60
        $region38: #{tpu_custom_call.1} parent=31 // pred_check_branch
          %181 = sbr.rel (%p179) target = $region40
        $region39: #{tpu_custom_call.1} parent=31 // pred_region
          %182 = dma.done [#allocation6], 3072
        $region40: #{tpu_custom_call.1} parent=31 // pred_fallthru
          _
        %s183 = sand.u32 %s26, 1
        %s184 = scalar_lea.sflag [#allocation4], %s183
        %s185 = sand.u32 %s26, 1
        %s186 = smul.addr %s185, 32
        %s187 = scalar_lea.vmem [#allocation3], %s186
        %p188 = pneg %p39
        %p189 = pneg %p36
        %p190 = pneg %p60
        %p191 = pneg %p57
        %p192 = pneg %p81
        %p193 = pneg %p78
        %p194 = pneg %p107
        %p195 = pneg %p104
        %p196 = scmp.lt.s32.totalorder %s18, 1
        %s197 = scalar_select %p196, %s18, 1
        %s198 = smul.addr %s197, 24
        %s199 = smul.addr %s198, 8
        %s200 = scalar_lea.vmem %s3, %s199
        %p201 = scmp.lt.s32.totalorder %s18, 1
        %s202 = scalar_select %p201, %s18, 1
        %s203 = smul.addr %s202, 24
        %s204 = smul.addr %s203, 8
        %s205 = scalar_lea.vmem %s3, %s204
        %vm207 = vcmask 523264
        %208 = vst.msk [vmem:[#allocation2] sm:$0xff] %vm207, 0.0
        %209 = vst.msk [vmem:[#allocation2 + $0x8] sm:$0xff] %vm207, 0.0
        %vm210 = vcmask 519168
        %211 = vst.msk [vmem:[#allocation2 + $0x10] sm:$0xf] %vm210, 0.0
        %v212 = vld [vmem:[%s174] sm:$0xf]
        %v213 = vld [vmem:[%s174 + $0x4] sm:$0xf]
        %v214 = vunpack.c.l.bf16 %v212
        %v215 = vunpack.c.l.bf16 %v213
        %vm216 = vcmask 130048
        %217 = vst.msk [vmem:[#allocation2 + $0x2] sm:$0xff] %vm216, %v214
        %218 = vst.msk [vmem:[#allocation2 + $0xa] sm:$0xff] %vm216, %v215
        %s219 = scalar_lea.vmem %s174, 8 [#allocation3]
        %v220 = vld [vmem:[%s219] sm:$0xf]
        %v221 = vld [vmem:[%s219 + $0x4] sm:$0xf]
        %v222 = vunpack.c.l.bf16 %v220
        %v223 = vunpack.c.l.bf16 %v221
        %226 = vrot.lane.b32.xlu0 %v222, 16
        %v227 = vpop.permute.xlu0 %226
        %228 = vrot.lane.b32.xlu0 %v223, 16
        %v229 = vpop.permute.xlu0 %228
        %vm232 = vcmask 261248
        %233 = vst.msk [vmem:[#allocation2 + $0x2] sm:$0xff] %vm232, %v227
        %234 = vst.msk [vmem:[#allocation2 + $0xa] sm:$0xff] %vm232, %v229
        %s235 = scalar_lea.vmem %s174, 16 [#allocation3]
        %v236 = vld [vmem:[%s235] sm:$0xf]
        %v237 = vld [vmem:[%s235 + $0x4] sm:$0xf]
        %v238 = vunpack.c.l.bf16 %v236
        %v239 = vunpack.c.l.bf16 %v237
        %242 = vrot.lane.b32.xlu0 %v238, 32
        %v243 = vpop.permute.xlu0 %242
        %244 = vrot.lane.b32.xlu0 %v239, 32
        %v245 = vpop.permute.xlu0 %244
        %vm248 = vcmask 392448
        %249 = vst.msk [vmem:[#allocation2 + $0x2] sm:$0xff] %vm248, %v243
        %250 = vst.msk [vmem:[#allocation2 + $0xa] sm:$0xff] %vm248, %v245
        %s251 = scalar_lea.vmem %s174, 24 [#allocation3]
        %v252 = vld [vmem:[%s251] sm:$0xf]
        %v253 = vld [vmem:[%s251 + $0x4] sm:$0xf]
        %v254 = vunpack.c.l.bf16 %v252
        %v255 = vunpack.c.l.bf16 %v253
        %258 = vrot.lane.b32.xlu0 %v254, 48
        %v259 = vpop.permute.xlu0 %258
        %260 = vrot.lane.b32.xlu0 %v255, 48
        %v261 = vpop.permute.xlu0 %260
        %vm264 = vcmask 523648
        %265 = vst.msk [vmem:[#allocation2 + $0x2] sm:$0xff] %vm264, %v259
        %266 = vst.msk [vmem:[#allocation2 + $0xa] sm:$0xff] %vm264, %v261
        %v267 = vld [vmem:[%s2] sm:$0x3]
        %v269 = vlaneseq
        %v270 = vshrl.u32 %v269, 7
        %v271 = vsub.s32 0, %v270
        %v272 = vrot.slane %v267, %v271
        %v273 = vlaneseq
        %v274 = vshrl.u32 %v273, 7
        %v275 = vsub.s32 1, %v274
        %v276 = vrot.slane %v267, %v275
        %v279 = vld [vmem:[#allocation2] sm:$0xff]
        %v280 = vld [vmem:[#allocation2 + $0x8] sm:$0xff]
        %v281 = vld [vmem:[#allocation2 + $0x10] sm:$0x3]
        %v282 = vpack.c.bf16 %v280, %v279
        %v283 = vpack.c.bf16 %v281, %v281
        %v284 = vld [vmem:[#allocation5] sm:$0xff]
        %v285 = vld [vmem:[#allocation5 + $0x8] sm:$0xff]
        %v286 = vld [vmem:[#allocation5 + $0x10] sm:$0xff]
        %v287 = vld [vmem:[#allocation5 + $0x18] sm:$0xff]
        %v288 = vld [vmem:[#allocation5 + $0x20] sm:$0xff]
        %v289 = vld [vmem:[#allocation5 + $0x28] sm:$0xff]
        %v290 = vld [vmem:[#allocation5 + $0x30] sm:$0xff]
        %v291 = vld [vmem:[#allocation5 + $0x38] sm:$0xff]
        %v300 = vunpack.c.l.b16 %v284
        %v301 = vunpack.c.h.b16 %v284
        %v302 = vunpack.c.l.b16 %v285
        %v303 = vunpack.c.h.b16 %v285
        %v304 = vunpack.c.l.b16 %v286
        %v305 = vunpack.c.h.b16 %v286
        %v306 = vunpack.c.l.b16 %v287
        %v307 = vunpack.c.h.b16 %v287
        %v308 = vunpack.c.l.b16 %v288
        %v309 = vunpack.c.h.b16 %v288
        %v310 = vunpack.c.l.b16 %v289
        %v311 = vunpack.c.h.b16 %v289
        %v312 = vunpack.c.l.b16 %v290
        %v313 = vunpack.c.h.b16 %v290
        %v314 = vunpack.c.l.b16 %v291
        %v315 = vunpack.c.h.b16 %v291
        %v316 = vpack.c.b16 %v302, %v300
        %v317 = vpack.c.b16 %v303, %v301
        %v318 = vpack.c.b16 %v306, %v304
        %v319 = vpack.c.b16 %v307, %v305
        %v320 = vpack.c.b16 %v310, %v308
        %v321 = vpack.c.b16 %v311, %v309
        %v322 = vpack.c.b16 %v314, %v312
        %v323 = vpack.c.b16 %v315, %v313
        %v333 = vsel %vm207, %v282, 0
        %v336 = vsel %vm207, %v283, 0
        %338 = vmatprep.subr.bf16.mxu0 %v317
        %339 = vmatpush1.bf16.msra.mxu0 %v316
        %340 = vmatprep.subr.bf16.mxu0 %v319
        %341 = vmatpush1.bf16.msra.mxu0 %v318
        %342 = vmatprep.subr.bf16.mxu0 %v321
        %343 = vmatpush1.bf16.msra.mxu0 %v320
        %344 = vmatprep.subr.bf16.mxu0 %v323
        %345 = vmatpush1.bf16.msra.mxu0 %v322
        %346 = vmatprep.subr.bf16.mxu0 0
        %347 = vmatpush1.bf16.msra.mxu0 0
        %348 = vmatprep.subr.bf16.mxu0 0
        %349 = vmatpush1.bf16.msra.mxu0 0
        %350 = vmatprep.subr.bf16.mxu0 0
        %351 = vmatpush1.bf16.msra.mxu0 0
        %352 = vmatprep.subr.bf16.mxu0 0
        %353 = vmatpush1.bf16.msra.mxu0 0
        %354 = vmatprep.subr.bf16.mxu0 0
        %355 = vmatpush1.bf16.msra.mxu0 0
        %356 = vmatprep.subr.bf16.mxu0 0
        %357 = vmatpush1.bf16.msra.mxu0 0
        %358 = vmatprep.subr.bf16.mxu0 0
        %359 = vmatpush1.bf16.msra.mxu0 0
        %360 = vmatprep.subr.bf16.mxu0 0
        %361 = vmatpush1.bf16.msra.mxu0 0
        %362 = vmatprep.subr.bf16.mxu0 0
        %363 = vmatpush1.bf16.msra.mxu0 0
        %364 = vmatprep.subr.bf16.mxu0 0
        %365 = vmatpush1.bf16.msra.mxu0 0
        %366 = vmatprep.subr.bf16.mxu0 0
        %367 = vmatpush1.bf16.msra.mxu0 0
        %368 = vmatprep.subr.bf16.mxu0 0
        %369 = vmatpush1.bf16.msra.mxu0 0
        %370 = vmatprep.mubr.bf16.mxu0 0
        %371 = vmatmul.mubr.bf16.gmra.mrb[0].mxu0 %v333
        %v372 = vpop.f32.mrb[0].mxu0
        %v373 = vadd.f32 0.0, %v372
        %v374 = vpop.f32.mrb[0].mxu0
        %v375 = vadd.f32 0.0, %v374
        %v376 = vpop.f32.mrb[0].mxu0
        %v377 = vadd.f32 0.0, %v376
        %v378 = vpop.f32.mrb[0].mxu0
        %v379 = vadd.f32 0.0, %v378
        %380 = vmatprep.mubr.bf16.mxu0 0
        %381 = vmatmul.mubr.bf16.gmra.mrb[0].mxu0 %v336
        %v382 = vpop.f32.mrb[0].mxu0
        %v383 = vadd.f32 0.0, %v382
        %v384 = vpop.f32.mrb[0].mxu0
        %v385 = vadd.f32 0.0, %v384
        %v386 = vpop.f32.mrb[0].mxu0
        %v387 = vpop.f32.mrb[0].mxu0
        %388 = vdwg.mxu0
        %v389 = vadd.f32 %v272, %v373
        %v390 = vadd.f32 %v276, %v375
        %v391 = vadd.f32 %v272, %v377
        %v392 = vadd.f32 %v276, %v379
        %v393 = vadd.f32 %v272, %v383
        %v394 = vadd.f32 %v276, %v385
        %v395 = vld [vmem:[#allocation2 + $0x1] sm:$0xff]
        %v396 = vld [vmem:[#allocation2 + $0x9] sm:$0xff]
        %v397 = vld [vmem:[#allocation2 + $0x11] sm:$0x3]
        %v398 = vpack.c.bf16 %v396, %v395
        %v399 = vpack.c.bf16 %v397, %v397
        %s400 = scalar_lea.vmem [#allocation5], 64
        %v401 = vld [vmem:[%s400] sm:$0xff]
        %v402 = vld [vmem:[%s400 + $0x8] sm:$0xff]
        %v403 = vld [vmem:[%s400 + $0x10] sm:$0xff]
        %v404 = vld [vmem:[%s400 + $0x18] sm:$0xff]
        %v405 = vld [vmem:[%s400 + $0x20] sm:$0xff]
        %v406 = vld [vmem:[%s400 + $0x28] sm:$0xff]
        %v407 = vld [vmem:[%s400 + $0x30] sm:$0xff]
        %v408 = vld [vmem:[%s400 + $0x38] sm:$0xff]
        %v417 = vunpack.c.l.b16 %v401
        %v418 = vunpack.c.h.b16 %v401
        %v419 = vunpack.c.l.b16 %v402
        %v420 = vunpack.c.h.b16 %v402
        %v421 = vunpack.c.l.b16 %v403
        %v422 = vunpack.c.h.b16 %v403
        %v423 = vunpack.c.l.b16 %v404
        %v424 = vunpack.c.h.b16 %v404
        %v425 = vunpack.c.l.b16 %v405
        %v426 = vunpack.c.h.b16 %v405
        %v427 = vunpack.c.l.b16 %v406
        %v428 = vunpack.c.h.b16 %v406
        %v429 = vunpack.c.l.b16 %v407
        %v430 = vunpack.c.h.b16 %v407
        %v431 = vunpack.c.l.b16 %v408
        %v432 = vunpack.c.h.b16 %v408
        %v433 = vpack.c.b16 %v419, %v417
        %v434 = vpack.c.b16 %v420, %v418
        %v435 = vpack.c.b16 %v423, %v421
        %v436 = vpack.c.b16 %v424, %v422
        %v437 = vpack.c.b16 %v427, %v425
        %v438 = vpack.c.b16 %v428, %v426
        %v439 = vpack.c.b16 %v431, %v429
        %v440 = vpack.c.b16 %v432, %v430
        %v450 = vsel %vm207, %v398, 0
        %v453 = vsel %vm207, %v399, 0
        %455 = vmatprep.subr.bf16.mxu0 %v434
        %456 = vmatpush1.bf16.msra.mxu0 %v433
        %457 = vmatprep.subr.bf16.mxu0 %v436
        %458 = vmatpush1.bf16.msra.mxu0 %v435
        %459 = vmatprep.subr.bf16.mxu0 %v438
        %460 = vmatpush1.bf16.msra.mxu0 %v437
        %461 = vmatprep.subr.bf16.mxu0 %v440
        %462 = vmatpush1.bf16.msra.mxu0 %v439
        %463 = vmatprep.subr.bf16.mxu0 0
        %464 = vmatpush1.bf16.msra.mxu0 0
        %465 = vmatprep.subr.bf16.mxu0 0
        %466 = vmatpush1.bf16.msra.mxu0 0
        %467 = vmatprep.subr.bf16.mxu0 0
        %468 = vmatpush1.bf16.msra.mxu0 0
        %469 = vmatprep.subr.bf16.mxu0 0
        %470 = vmatpush1.bf16.msra.mxu0 0
        %471 = vmatprep.subr.bf16.mxu0 0
        %472 = vmatpush1.bf16.msra.mxu0 0
        %473 = vmatprep.subr.bf16.mxu0 0
        %474 = vmatpush1.bf16.msra.mxu0 0
        %475 = vmatprep.subr.bf16.mxu0 0
        %476 = vmatpush1.bf16.msra.mxu0 0
        %477 = vmatprep.subr.bf16.mxu0 0
        %478 = vmatpush1.bf16.msra.mxu0 0
        %479 = vmatprep.subr.bf16.mxu0 0
        %480 = vmatpush1.bf16.msra.mxu0 0
        %481 = vmatprep.subr.bf16.mxu0 0
        %482 = vmatpush1.bf16.msra.mxu0 0
        %483 = vmatprep.subr.bf16.mxu0 0
        %484 = vmatpush1.bf16.msra.mxu0 0
        %485 = vmatprep.subr.bf16.mxu0 0
        %486 = vmatpush1.bf16.msra.mxu0 0
        %487 = vmatprep.mubr.bf16.mxu0 0
        %488 = vmatmul.mubr.bf16.gmra.mrb[0].mxu0 %v450
        %v489 = vpop.f32.mrb[0].mxu0
        %v490 = vadd.f32 0.0, %v489
        %v491 = vpop.f32.mrb[0].mxu0
        %v492 = vadd.f32 0.0, %v491
        %v493 = vpop.f32.mrb[0].mxu0
        %v494 = vadd.f32 0.0, %v493
        %v495 = vpop.f32.mrb[0].mxu0
        %v496 = vadd.f32 0.0, %v495
        %497 = vmatprep.mubr.bf16.mxu0 0
        %498 = vmatmul.mubr.bf16.gmra.mrb[0].mxu0 %v453
        %v499 = vpop.f32.mrb[0].mxu0
        %v500 = vadd.f32 0.0, %v499
        %v501 = vpop.f32.mrb[0].mxu0
        %v502 = vadd.f32 0.0, %v501
        %v503 = vpop.f32.mrb[0].mxu0
        %v504 = vpop.f32.mrb[0].mxu0
        %505 = vdwg.mxu0
        %v506 = vadd.f32 %v389, %v490
        %v507 = vadd.f32 %v390, %v492
        %v508 = vadd.f32 %v391, %v494
        %v509 = vadd.f32 %v392, %v496
        %v510 = vadd.f32 %v393, %v500
        %v511 = vadd.f32 %v394, %v502
        %v512 = vld [vmem:[#allocation2 + $0x2] sm:$0xff]
        %v513 = vld [vmem:[#allocation2 + $0xa] sm:$0xff]
        %v514 = vld [vmem:[#allocation2 + $0x12] sm:$0x3]
        %v515 = vpack.c.bf16 %v513, %v512
        %v516 = vpack.c.bf16 %v514, %v514
        %s517 = scalar_lea.vmem [#allocation5], 128
        %v518 = vld [vmem:[%s517] sm:$0xff]
        %v519 = vld [vmem:[%s517 + $0x8] sm:$0xff]
        %v520 = vld [vmem:[%s517 + $0x10] sm:$0xff]
        %v521 = vld [vmem:[%s517 + $0x18] sm:$0xff]
        %v522 = vld [vmem:[%s517 + $0x20] sm:$0xff]
        %v523 = vld [vmem:[%s517 + $0x28] sm:$0xff]
        %v524 = vld [vmem:[%s517 + $0x30] sm:$0xff]
        %v525 = vld [vmem:[%s517 + $0x38] sm:$0xff]
        %v534 = vunpack.c.l.b16 %v518
        %v535 = vunpack.c.h.b16 %v518
        %v536 = vunpack.c.l.b16 %v519
        %v537 = vunpack.c.h.b16 %v519
        %v538 = vunpack.c.l.b16 %v520
        %v539 = vunpack.c.h.b16 %v520
        %v540 = vunpack.c.l.b16 %v521
        %v541 = vunpack.c.h.b16 %v521
        %v542 = vunpack.c.l.b16 %v522
        %v543 = vunpack.c.h.b16 %v522
        %v544 = vunpack.c.l.b16 %v523
        %v545 = vunpack.c.h.b16 %v523
        %v546 = vunpack.c.l.b16 %v524
        %v547 = vunpack.c.h.b16 %v524
        %v548 = vunpack.c.l.b16 %v525
        %v549 = vunpack.c.h.b16 %v525
        %v550 = vpack.c.b16 %v536, %v534
        %v551 = vpack.c.b16 %v537, %v535
        %v552 = vpack.c.b16 %v540, %v538
        %v553 = vpack.c.b16 %v541, %v539
        %v554 = vpack.c.b16 %v544, %v542
        %v555 = vpack.c.b16 %v545, %v543
        %v556 = vpack.c.b16 %v548, %v546
        %v557 = vpack.c.b16 %v549, %v547
        %v567 = vsel %vm207, %v515, 0
        %v570 = vsel %vm207, %v516, 0
        %572 = vmatprep.subr.bf16.mxu0 %v551
        %573 = vmatpush1.bf16.msra.mxu0 %v550
        %574 = vmatprep.subr.bf16.mxu0 %v553
        %575 = vmatpush1.bf16.msra.mxu0 %v552
        %576 = vmatprep.subr.bf16.mxu0 %v555
        %577 = vmatpush1.bf16.msra.mxu0 %v554
        %578 = vmatprep.subr.bf16.mxu0 %v557
        %579 = vmatpush1.bf16.msra.mxu0 %v556
        %580 = vmatprep.subr.bf16.mxu0 0
        %581 = vmatpush1.bf16.msra.mxu0 0
        %582 = vmatprep.subr.bf16.mxu0 0
        %583 = vmatpush1.bf16.msra.mxu0 0
        %584 = vmatprep.subr.bf16.mxu0 0
        %585 = vmatpush1.bf16.msra.mxu0 0
        %586 = vmatprep.subr.bf16.mxu0 0
        %587 = vmatpush1.bf16.msra.mxu0 0
        %588 = vmatprep.subr.bf16.mxu0 0
        %589 = vmatpush1.bf16.msra.mxu0 0
        %590 = vmatprep.subr.bf16.mxu0 0
        %591 = vmatpush1.bf16.msra.mxu0 0
        %592 = vmatprep.subr.bf16.mxu0 0
        %593 = vmatpush1.bf16.msra.mxu0 0
        %594 = vmatprep.subr.bf16.mxu0 0
        %595 = vmatpush1.bf16.msra.mxu0 0
        %596 = vmatprep.subr.bf16.mxu0 0
        %597 = vmatpush1.bf16.msra.mxu0 0
        %598 = vmatprep.subr.bf16.mxu0 0
        %599 = vmatpush1.bf16.msra.mxu0 0
        %600 = vmatprep.subr.bf16.mxu0 0
        %601 = vmatpush1.bf16.msra.mxu0 0
        %602 = vmatprep.subr.bf16.mxu0 0
        %603 = vmatpush1.bf16.msra.mxu0 0
        %604 = vmatprep.mubr.bf16.mxu0 0
        %605 = vmatmul.mubr.bf16.gmra.mrb[0].mxu0 %v567
        %v606 = vpop.f32.mrb[0].mxu0
        %v607 = vadd.f32 0.0, %v606
        %v608 = vpop.f32.mrb[0].mxu0
        %v609 = vadd.f32 0.0, %v608
        %v610 = vpop.f32.mrb[0].mxu0
        %v611 = vadd.f32 0.0, %v610
        %v612 = vpop.f32.mrb[0].mxu0
        %v613 = vadd.f32 0.0, %v612
        %614 = vmatprep.mubr.bf16.mxu0 0
        %615 = vmatmul.mubr.bf16.gmra.mrb[0].mxu0 %v570
        %v616 = vpop.f32.mrb[0].mxu0
        %v617 = vadd.f32 0.0, %v616
        %v618 = vpop.f32.mrb[0].mxu0
        %v619 = vadd.f32 0.0, %v618
        %v620 = vpop.f32.mrb[0].mxu0
        %v621 = vpop.f32.mrb[0].mxu0
        %622 = vdwg.mxu0
        %v623 = vadd.f32 %v506, %v607
        %v624 = vadd.f32 %v507, %v609
        %v625 = vadd.f32 %v508, %v611
        %v626 = vadd.f32 %v509, %v613
        %v627 = vadd.f32 %v510, %v617
        %v628 = vadd.f32 %v511, %v619
        %vm629 = vcmask 146432
        %630 = vst.msk [vmem:[%s205] sm:$0xff] %vm629, %v623
        %631 = vst.msk [vmem:[%s205 + $0x8] sm:$0xff] %vm629, %v625
        %vm632 = vcmask 140288
        %633 = vst.msk [vmem:[%s205 + $0x10] sm:$0x3] %vm632, %v627
        %637 = vrot.lane.b32.xlu0 %v623, 110
        %v638 = vpop.permute.xlu0 %637
        %639 = vrot.lane.b32.xlu0 %v625, 110
        %v640 = vpop.permute.xlu0 %639
        %641 = vrot.lane.b32.xlu0 %v627, 110
        %v642 = vpop.permute.xlu0 %641
        %s646 = scalar_lea.vmem %s205, 24
        %647 = vst.msk [vmem:[%s646] sm:$0xff] %vm629, %v638
        %648 = vst.msk [vmem:[%s646 + $0x8] sm:$0xff] %vm629, %v640
        %649 = vst.msk [vmem:[%s646 + $0x10] sm:$0x3] %vm632, %v642
        %650 = vrot.lane.b32.xlu0 %v623, 92
        %v651 = vpop.permute.xlu0 %650
        %652 = vrot.lane.b32.xlu0 %v625, 92
        %v653 = vpop.permute.xlu0 %652
        %654 = vrot.lane.b32.xlu0 %v627, 92
        %v655 = vpop.permute.xlu0 %654
        %s659 = scalar_lea.vmem %s205, 48
        %660 = vst.msk [vmem:[%s659] sm:$0xff] %vm629, %v651
        %661 = vst.msk [vmem:[%s659 + $0x8] sm:$0xff] %vm629, %v653
        %662 = vst.msk [vmem:[%s659 + $0x10] sm:$0x3] %vm632, %v655
        %663 = vrot.lane.b32.xlu0 %v623, 74
        %v664 = vpop.permute.xlu0 %663
        %665 = vrot.lane.b32.xlu0 %v625, 74
        %v666 = vpop.permute.xlu0 %665
        %667 = vrot.lane.b32.xlu0 %v627, 74
        %v668 = vpop.permute.xlu0 %667
        %s672 = scalar_lea.vmem %s205, 72
        %673 = vst.msk [vmem:[%s672] sm:$0xff] %vm629, %v664
        %674 = vst.msk [vmem:[%s672 + $0x8] sm:$0xff] %vm629, %v666
        %675 = vst.msk [vmem:[%s672 + $0x10] sm:$0x3] %vm632, %v668
        %676 = vrot.lane.b32.xlu0 %v623, 56
        %v677 = vpop.permute.xlu0 %676
        %678 = vrot.lane.b32.xlu0 %v625, 56
        %v679 = vpop.permute.xlu0 %678
        %680 = vrot.lane.b32.xlu0 %v627, 56
        %v681 = vpop.permute.xlu0 %680
        %s685 = scalar_lea.vmem %s205, 96
        %686 = vst.msk [vmem:[%s685] sm:$0xff] %vm629, %v677
        %687 = vst.msk [vmem:[%s685 + $0x8] sm:$0xff] %vm629, %v679
        %688 = vst.msk [vmem:[%s685 + $0x10] sm:$0x3] %vm632, %v681
        %689 = vrot.lane.b32.xlu0 %v623, 38
        %v690 = vpop.permute.xlu0 %689
        %691 = vrot.lane.b32.xlu0 %v625, 38
        %v692 = vpop.permute.xlu0 %691
        %693 = vrot.lane.b32.xlu0 %v627, 38
        %v694 = vpop.permute.xlu0 %693
        %s698 = scalar_lea.vmem %s205, 120
        %699 = vst.msk [vmem:[%s698] sm:$0xff] %vm629, %v690
        %700 = vst.msk [vmem:[%s698 + $0x8] sm:$0xff] %vm629, %v692
        %701 = vst.msk [vmem:[%s698 + $0x10] sm:$0x3] %vm632, %v694
        %702 = vrot.lane.b32.xlu0 %v623, 20
        %v703 = vpop.permute.xlu0 %702
        %704 = vrot.lane.b32.xlu0 %v625, 20
        %v705 = vpop.permute.xlu0 %704
        %706 = vrot.lane.b32.xlu0 %v627, 20
        %v707 = vpop.permute.xlu0 %706
        %s711 = scalar_lea.vmem %s205, 144
        %712 = vst.msk [vmem:[%s711] sm:$0xff] %vm629, %v703
        %713 = vst.msk [vmem:[%s711 + $0x8] sm:$0xff] %vm629, %v705
        %714 = vst.msk [vmem:[%s711 + $0x10] sm:$0x3] %vm632, %v707
        %718 = vrot.lane.b32.xlu0 %v623, 2
        %v719 = vpop.permute.xlu0 %718
        %720 = vrot.lane.b32.xlu0 %v624, 2
        %v721 = vpop.permute.xlu0 %720
        %722 = vrot.lane.b32.xlu0 %v625, 2
        %v723 = vpop.permute.xlu0 %722
        %724 = vrot.lane.b32.xlu0 %v626, 2
        %v725 = vpop.permute.xlu0 %724
        %726 = vrot.lane.b32.xlu0 %v627, 2
        %v727 = vpop.permute.xlu0 %726
        %728 = vrot.lane.b32.xlu0 %v628, 2
        %v729 = vpop.permute.xlu0 %728
        %vm730 = vcmask 15360
        %v731 = vsel %vm730, %v719, %v721
        %v732 = vsel %vm730, %v723, %v725
        %v733 = vsel %vm730, %v727, %v729
        %s737 = scalar_lea.vmem %s205, 168
        %738 = vst.msk [vmem:[%s737] sm:$0xff] %vm629, %v731
        %739 = vst.msk [vmem:[%s737 + $0x8] sm:$0xff] %vm629, %v732
        %740 = vst.msk [vmem:[%s737 + $0x10] sm:$0x3] %vm632, %v733
        %p741 = scmp.lt.s32.totalorder %s18, 1
        %s742 = scalar_select %p741, %s18, 1
        %s743 = smul.addr %s742, 24
        %s744 = smul.addr %s743, 8
        %s745 = scalar_lea.vmem %s3, %s744
        // Predicated region
        $region41: #{tpu_custom_call.1} parent=31 // pred_check
          %p746 = pneg %p104
        $region42: #{tpu_custom_call.1} parent=31 // pred_check_branch
          %748 = sbr.rel (%p746) target = $region44
        $region43: #{tpu_custom_call.1} parent=31 // pred_region
          _
        $region44: #{tpu_custom_call.1} parent=31 // pred_fallthru
          _
      $region32: #{tpu_custom_call.1} parent=5 // pred_fallthru
        _
      %p749 = scmp.le.s32.totalorder 2, %s13
      // Predicated region
      $region45: #{tpu_custom_call.1} parent=5 // pred_check
        %p750 = pneg %p749
      $region46: #{tpu_custom_call.1} parent=5 // pred_check_branch
        %752 = sbr.rel (%p750) target = $region48
      $region47: #{tpu_custom_call.1} parent=5 // pred_region
        %s753 = ssub.s32 %s13, 2
        // Predicated region
        $region49: #{tpu_custom_call.1} parent=47 // pred_check
          %p754 = pneg %p110
        $region50: #{tpu_custom_call.1} parent=47 // pred_check_branch
          %756 = sbr.rel (%p754) target = $region52
        $region51: #{tpu_custom_call.1} parent=47 // pred_region
          %p757 = scmp.lt.s32.totalorder %s19, 1
          %s758 = scalar_select %p757, %s19, 1
          %s759 = smul.addr %s758, 24
          %s760 = smul.addr %s759, 8
          %s761 = scalar_lea.vmem %s3, %s760
        $region52: #{tpu_custom_call.1} parent=47 // pred_fallthru
          _
      $region48: #{tpu_custom_call.1} parent=5 // pred_fallthru
        _
    $region6: #{tpu_custom_call.1} parent=1 // loop_footer
      %s17 = sadd.s32 1, %s13
    $region7: #{tpu_custom_call.1} parent=1 // loop_footer_branch
      %12 = sbr.rel target = $region3
    $region8: #{tpu_custom_call.1} parent=1 // loop_exit
      _
    %762 = vsyncpa [#allocation4], 1
    %s763 = scalar_lea.sflag [#allocation4], 1
    %764 = vsyncpa %s763, 1
    %765 = vsyncpa [#allocation6], 1

</llo_original>
